<compile_context>
chip_gen: v6e
topology: v6e:2x2x1
jax: 0.10.0
libtpu: 0.0.40
codegen_flags: <defaults>
</compile_context>

<pallas_src>
import jax
import jax.numpy as jnp
from jax.experimental import pallas as pl
from jax.experimental.pallas import tpu as pltpu

_LANES = 128
_SUBLANES = 8
_VREG_ELEMS = _LANES * _SUBLANES          # 1024 int32 = one vreg
_MAX_VREGS_PER_BLOCK = 512                # 512 * 4 KiB = 2 MiB per VMEM buffer


def make_test_module(v: int):
    """Builds the Pallas-backed equivalent of TestModule(v)."""
    v_const = int(v)  # baked into the kernel as an immediate

    def _add_v_kernel(x_ref, o_ref):
        # One VPU elementwise add over the whole (tile_rows, 128) VMEM tile;
        # v_const lowers to an immediate — no extra operand traffic.
        o_ref[...] = x_ref[...] + jnp.int32(v_const)

    def _pallas_add(x2d, tile_rows):
        rows, lanes = x2d.shape  # rows % tile_rows == 0, lanes == 128 (static)
        grid_n = rows // tile_rows
        return pl.pallas_call(
            _add_v_kernel,
            out_shape=jax.ShapeDtypeStruct((rows, lanes), jnp.int32),
            grid=(grid_n,),
            in_specs=[pl.BlockSpec((tile_rows, lanes), lambda i: (i, 0))],
            out_specs=pl.BlockSpec((tile_rows, lanes), lambda i: (i, 0)),
            cost_estimate=pl.CostEstimate(
                flops=rows * lanes,
                bytes_accessed=2 * 4 * rows * lanes,
                transcendentals=0,
            ),
            compiler_params=pltpu.CompilerParams(
                dimension_semantics=("parallel",)
            ),
        )(x2d)

    @jax.jit
    def forward(x):
        """v + x.  Accepts a scalar (TestModule.forward semantics) or any int array."""
        x_arr = jnp.asarray(x, dtype=jnp.int32)
        flat = x_arr.reshape(-1)
        n = flat.shape[0]

        # Lane-dense layout: pad to whole (8,128) vregs, then tile with the
        # biggest block that keeps each VMEM buffer <= 2 MiB.
        n_vregs = pl.cdiv(n, _VREG_ELEMS)
        vregs_per_block = min(n_vregs, _MAX_VREGS_PER_BLOCK)
        grid_n = pl.cdiv(n_vregs, vregs_per_block)
        n_pad = grid_n * vregs_per_block * _VREG_ELEMS

        padded = jnp.zeros((n_pad,), jnp.int32).at[:n].set(flat)
        x2d = padded.reshape(n_pad // _LANES, _LANES)
        out2d = _pallas_add(x2d, vregs_per_block * _SUBLANES)
        return out2d.reshape(-1)[:n].reshape(x_arr.shape)

    return forward


if __name__ == "__main__":
    key = jax.random.PRNGKey(0)
    k1, k2 = jax.random.split(key)

    v = 7  # the constant stored by TestModule.__init__
    module = make_test_module(v)

    # 1) Scalar path — exact TestModule.forward(x: int) semantics.
    x_scalar = jax.random.randint(k1, (), minval=0, maxval=100, dtype=jnp.int32)
    out_scalar = jax.block_until_ready(module(x_scalar))
    expected = v + int(x_scalar)
    assert int(out_scalar) == expected, f"expected {expected}, got {int(out_scalar)}"

    # 2) Batched path — amortizes the single kernel launch over many adds.
    x_batch = jax.random.randint(
        k2, (2, 4, 16, 16), minval=-1000, maxval=1000, dtype=jnp.int32
    )
    out_batch = jax.block_until_ready(module(x_batch))
    assert out_batch.shape == x_batch.shape
    assert bool(jnp.all(out_batch == x_batch + jnp.int32(v)))

    print("KERNEL_OK")
</pallas_src>

<mosaic_0001>
module attributes {stable_mosaic.version = 11 : i64} {
  func.func @_add_v_kernel(%arg0: i32, %arg1: memref<8x128xi32, #tpu.memory_space<vmem>>, %arg2: memref<8x128xi32, #tpu.memory_space<vmem>>) attributes {dimension_semantics = [#tpu.dimension_semantics<parallel>], iteration_bounds = array<i64: 1>, scalar_prefetch = 0 : i64, scratch_operands = 0 : i64, tpu.core_type = #tpu.core_type<tc>, window_params = [{transform_indices = @transform_0, window_bounds = array<i64: 8, 128>}, {transform_indices = @transform_1, window_bounds = array<i64: 8, 128>}]} {
    %c0 = arith.constant 0 : index
    %c0_0 = arith.constant 0 : index
    %0 = vector.load %arg1[%c0, %c0_0] : memref<8x128xi32, #tpu.memory_space<vmem>>, vector<8x128xi32>
    %c7_i32 = arith.constant 7 : i32
    %1 = vector.broadcast %c7_i32 : i32 to vector<8x128xi32>
    %2 = arith.addi %0, %1 : vector<8x128xi32>
    %c0_1 = arith.constant 0 : index
    %c0_2 = arith.constant 0 : index
    %3 = vector.load %arg2[%c0_1, %c0_2] : memref<8x128xi32, #tpu.memory_space<vmem>>, vector<8x128xi32>
    tpu.vector_store %arg2[%c0_1, %c0_2], %2 {strides = array<i32>} : memref<8x128xi32, #tpu.memory_space<vmem>>, vector<8x128xi32>,
    return
  }
  func.func @transform_0(%arg0: i32) -> (i32, i32) {
    %c0_i32 = arith.constant 0 : i32
    %c0_i32_0 = arith.constant 0 : i32
    return %arg0, %c0_i32 : i32, i32
  }
  func.func @transform_1(%arg0: i32) -> (i32, i32) {
    %c0_i32 = arith.constant 0 : i32
    %c0_i32_0 = arith.constant 0 : i32
    return %arg0, %c0_i32 : i32, i32
  }
}

</mosaic_0001>

<llo_original>
// kernel: forward.1
$region0: #{forward.1}
  #allocation0 [shape = 'u32[]', space=smem, size = 0x4, offset = 0x4, fixed_abs, tag = 'smem constant byte address 0x4 - core index']
  #allocation1 [shape = 'u32[144,128]{1,0:T(1,128)}', space=vmem, size = 0x12000, scoped, tag = 'internal scratch']
  %s0 = inlined_call_operand.vmem [shape: s32[8,128], index: 0, kind: input, shape index: {}]
  %s1 = inlined_call_operand.vmem [shape: s32[8,128], index: 1, kind: output, shape index: {}]
  %s2 = sld [smem:[#allocation0]]
  $region14: #{forward.1} parent=0
    _
  %s4 = ssub.s32 1, %s2
  %s5 = scalar_select 0, %s4, %s2
  // Predicated region
  $region2: #{forward.1} parent=0 // pred_check
    _
  $region3: #{forward.1} parent=0 // pred_check_branch
    %7 = sbr.rel (0) target = $region5
  $region4: #{forward.1} parent=0 // pred_region
    _
  $region5: #{forward.1} parent=0 // pred_fallthru
    _
  %v8 = vld [vmem:[%s0] sm:$0xff]
  %v9 = vadd.s32 %v8, 7
  %10 = vst [vmem:[%s1] sm:$0xff] %v9
  // Predicated region
  $region6: #{forward.1} parent=0 // pred_check
    _
  $region7: #{forward.1} parent=0 // pred_check_branch
    %12 = sbr.rel (0) target = $region9
  $region8: #{forward.1} parent=0 // pred_region
    _
  $region9: #{forward.1} parent=0 // pred_fallthru
    _
  // Predicated region
  $region10: #{forward.1} parent=0 // pred_check
    _
  $region11: #{forward.1} parent=0 // pred_check_branch
    %14 = sbr.rel (0) target = $region13
  $region12: #{forward.1} parent=0 // pred_region
    _
  $region13: #{forward.1} parent=0 // pred_fallthru
    _

</llo_original>
